<compile_context>
chip_gen: v5e
topology: v5e:2x2
jax: 0.10.0
libtpu: 0.0.40
codegen_flags: <defaults>
</compile_context>

<pallas_src>
import math

import jax
import jax.numpy as jnp
from jax.experimental import pallas as pl
from jax.experimental.pallas import tpu as pltpu

_SQRT_2_OVER_PI = math.sqrt(2.0 / math.pi)


def _gelu_tanh(x):
    # PyTorch nn.GELU(approximate='tanh'):
    # 0.5 * x * (1 + tanh(sqrt(2/pi) * (x + 0.044715*x^3))), cubic folded.
    inner = _SQRT_2_OVER_PI * x * (1.0 + 0.044715 * x * x)
    return 0.5 * x * (1.0 + jnp.tanh(inner))


def _round_up(x, m):
    return (x + m - 1) // m * m


def _vmem_capacity_bytes():
    try:
        return int(pltpu.get_tpu_info().vmem_capacity_bytes)
    except Exception:
        pass
    try:
        kind = jax.devices()[0].device_kind.lower()
    except Exception:
        kind = ""
    if "v7" in kind:
        return 64 << 20
    if ("v5" in kind) or ("v6" in kind):
        return 128 << 20
    return 64 << 20  # conservative default that is safe on every generation


# ----------------------------- kernels --------------------------------------


def _mlp_kernel_resident(x_ref, w1_ref, b1_ref, w2_ref, b2_ref, o_ref):
    # Weights fully VMEM-resident; grid iterates over row tiles only.
    h = jnp.dot(x_ref[...], w1_ref[...], preferred_element_type=jnp.float32)
    h = h + b1_ref[...].astype(jnp.float32)
    g = _gelu_tanh(h)
    y = jnp.dot(g.astype(w2_ref.dtype), w2_ref[...],
                preferred_element_type=jnp.float32)
    o_ref[...] = (y + b2_ref[...].astype(jnp.float32)).astype(o_ref.dtype)


def _mlp_kernel_htiled_f32out(x_ref, w1_ref, b1_ref, w2_ref, b2_ref, o_ref):
    # H-tiled reduction; the f32 output block (resident across h) is the acc.
    h_idx = pl.program_id(1)

    @pl.when(h_idx == 0)
    def _init():
        o_ref[...] = jnp.zeros_like(o_ref)

    h = jnp.dot(x_ref[...], w1_ref[...], preferred_element_type=jnp.float32)
    h = h + b1_ref[...].astype(jnp.float32)
    g = _gelu_tanh(h)
    o_ref[...] += jnp.dot(g.astype(w2_ref.dtype), w2_ref[...],
                          preferred_element_type=jnp.float32)

    @pl.when(h_idx == pl.num_programs(1) - 1)
    def _finalize():
        o_ref[...] += b2_ref[...].astype(jnp.float32)


def _mlp_kernel_htiled_acc(x_ref, w1_ref, b1_ref, w2_ref, b2_ref, o_ref, acc_ref):
    # H-tiled reduction with an f32 scratch accumulator (non-f32 outputs).
    h_idx = pl.program_id(1)

    @pl.when(h_idx == 0)
    def _init():
        acc_ref[...] = jnp.zeros_like(acc_ref)

    h = jnp.dot(x_ref[...], w1_ref[...], preferred_element_type=jnp.float32)
    h = h + b1_ref[...].astype(jnp.float32)
    g = _gelu_tanh(h)
    acc_ref[...] += jnp.dot(g.astype(w2_ref.dtype), w2_ref[...],
                            preferred_element_type=jnp.float32)

    @pl.when(h_idx == pl.num_programs(1) - 1)
    def _finalize():
        o_ref[...] = (acc_ref[...]
                      + b2_ref[...].astype(jnp.float32)).astype(o_ref.dtype)


# --------------------------- tile selection ----------------------------------

_HTILE_CANDIDATES = (
    (1024, 1024), (1024, 512), (768, 1024), (768, 512),
    (512, 1024), (512, 512), (512, 256),
    (384, 512), (256, 512), (256, 256), (256, 128),
    (128, 256), (128, 128), (64, 128), (32, 128), (16, 128), (8, 128),
)
_RESIDENT_TM = (1024, 768, 512, 384, 256)


def _choose_config(m_hint, E, H, x_isz, w_isz, o_isz):
    vmem_cap = _vmem_capacity_bytes()
    budget = int(vmem_cap * 0.80)
    E_pad = _round_up(E, 128)
    H_pad128 = _round_up(H, 128)
    M8 = _round_up(max(int(m_hint), 8), 8)

    def common_bytes(tm, tH):
        # Double-buffered x/out tiles + biases + f32 intermediates (h, g,
        # second-dot result / accumulator) that the compiler materializes.
        return (2 * tm * E_pad * x_isz
                + 2 * tm * E_pad * o_isz
                + 2 * (tH + E_pad) * w_isz
                + 2 * tm * tH * 4
                + 2 * tm * E_pad * 4)

    # Fast path: whole padded W1/W2 resident in VMEM, grid over M only.
    for tm in _RESIDENT_TM:
        tm_eff = min(tm, M8)
        need = (common_bytes(tm_eff, H_pad128)
                + 2 * E_pad * H_pad128 * w_isz     # W1 (budget double-buffered)
                + 2 * H_pad128 * E_pad * w_isz)    # W2
        if need <= budget:
            return dict(mode="resident", tm=tm_eff, tH=H_pad128,
                        E_pad=E_pad, H_pad=H_pad128,
                        vmem_need=need, vmem_cap=vmem_cap)

    # General path: H-tiled reduction, weight tiles streamed per row tile.
    for tm, tH in _HTILE_CANDIDATES:
        tm_eff = min(tm, M8)
        tH_eff = min(tH, H_pad128)
        need = (common_bytes(tm_eff, tH_eff)
                + 2 * E_pad * tH_eff * w_isz
                + 2 * tH_eff * E_pad * w_isz)
        if need <= budget:
            return dict(mode="htiled", tm=tm_eff, tH=tH_eff,
                        E_pad=E_pad, H_pad=_round_up(H, tH_eff),
                        vmem_need=need, vmem_cap=vmem_cap)

    # Last resort (pathological shapes): smallest tiles.
    tm_eff, tH_eff = min(8, M8), 128
    return dict(mode="htiled", tm=tm_eff, tH=tH_eff, E_pad=E_pad,
                H_pad=_round_up(H, tH_eff), vmem_need=budget, vmem_cap=vmem_cap)


# ------------------------------ wrappers --------------------------------------


def _mlp_padded(x, w1p, b1p, w2p, b2p, E, H, cfg, x_compute_dtype, out_dtype):
    B, S, E_in = x.shape
    assert E_in == E, f"expected last dim {E}, got {E_in}"
    M = B * S
    out_dtype = jnp.dtype(out_dtype) if out_dtype is not None else jnp.dtype(x.dtype)

    E_pad, H_pad, tH = cfg["E_pad"], cfg["H_pad"], cfg["tH"]
    M8 = _round_up(M, 8)
    tm = min(cfg["tm"], M8)
    # Give both v7x TensorCores work when the whole batch fits a single tile.
    if tm == M8 and M8 >= 1024:
        tm = _round_up(M8 // 2, 8)
    M_pad = _round_up(M, tm)

    x2d = x.reshape(M, E).astype(x_compute_dtype)
    if (M_pad, E_pad) != (M, E):
        x2d = jnp.pad(x2d, ((0, M_pad - M), (0, E_pad - E)))

    x_isz = jnp.dtype(x_compute_dtype).itemsize
    w_isz = jnp.dtype(w1p.dtype).itemsize
    o_isz = out_dtype.itemsize

    if cfg["mode"] == "resident":
        grid = (M_pad // tm,)
        in_specs = [
            pl.BlockSpec((tm, E_pad), lambda i: (i, 0)),        # x row tile
            pl.BlockSpec((E_pad, H_pad), lambda i: (0, 0)),     # W1 (resident)
            pl.BlockSpec((1, H_pad), lambda i: (0, 0)),         # b1
            pl.BlockSpec((H_pad, E_pad), lambda i: (0, 0)),     # W2 (resident)
            pl.BlockSpec((1, E_pad), lambda i: (0, 0)),         # b2
        ]
        out_spec = pl.BlockSpec((tm, E_pad), lambda i: (i, 0))
        scratch_shapes = []
        kernel = _mlp_kernel_resident
        dim_sem = ("parallel",)
        weight_reads = 1
    else:
        grid = (M_pad // tm, H_pad // tH)
        in_specs = [
            pl.BlockSpec((tm, E_pad), lambda i, h: (i, 0)),     # x row tile
            pl.BlockSpec((E_pad, tH), lambda i, h: (0, h)),     # W1 H-tile
            pl.BlockSpec((1, tH), lambda i, h: (0, h)),         # b1 H-tile
            pl.BlockSpec((tH, E_pad), lambda i, h: (h, 0)),     # W2 H-tile
            pl.BlockSpec((1, E_pad), lambda i, h: (0, 0)),      # b2
        ]
        out_spec = pl.BlockSpec((tm, E_pad), lambda i, h: (i, 0))
        if out_dtype == jnp.float32:
            kernel = _mlp_kernel_htiled_f32out
            scratch_shapes = []
        else:
            kernel = _mlp_kernel_htiled_acc
            scratch_shapes = [pltpu.VMEM((tm, E_pad), jnp.float32)]
        dim_sem = ("parallel", "arbitrary")
        weight_reads = grid[0]

    vmem_cap = cfg["vmem_cap"]
    hard_cap = int(vmem_cap * 0.90)
    vmem_limit = int(min(cfg["vmem_need"] + (8 << 20), hard_cap))
    vmem_limit = max(vmem_limit, min(32 << 20, hard_cap))

    cost = pl.CostEstimate(
        flops=4 * M_pad * E_pad * H_pad,          # two matmuls: 2*M*E*H each
        transcendentals=M_pad * H_pad,            # tanh per hidden activation
        bytes_accessed=(M_pad * E_pad * (x_isz + o_isz)
                        + weight_reads * (w1p.size + w2p.size) * w_isz
                        + weight_reads * (b1p.size + b2p.size) * w_isz),
    )

    out2d = pl.pallas_call(
        kernel,
        out_shape=jax.ShapeDtypeStruct((M_pad, E_pad), out_dtype),
        grid_spec=pltpu.PrefetchScalarGridSpec(
            num_scalar_prefetch=0,
            grid=grid,
            in_specs=in_specs,
            out_specs=out_spec,
            scratch_shapes=scratch_shapes,
        ),
        compiler_params=pltpu.CompilerParams(
            dimension_semantics=dim_sem,
            vmem_limit_bytes=vmem_limit,
        ),
        cost_estimate=cost,
    )(x2d, w1p, b1p, w2p, b2p)

    return out2d[:M, :E].reshape(B, S, E)


def make_mlp(w1, b1, w2, b2, *, m_hint=4096, out_dtype=None):
    """Pad/cast parameters once, return a closure x -> MLP(x).

    w1: (E, H), b1: (H,), w2: (H, E), b2: (E,) (i.e. transposed vs PyTorch
    storage).  The (HBM->HBM) weight padding is hoisted here so repeated
    forward calls skip it; jnp.pad is skipped entirely when already aligned.
    """
    E, H = w1.shape
    assert w2.shape == (H, E) and b1.shape == (H,) and b2.shape == (E,)

    w_dtype = w1.dtype
    x_compute_dtype = w_dtype                       # stage x in the weight dtype
    w_isz = jnp.dtype(w_dtype).itemsize
    x_isz = jnp.dtype(x_compute_dtype).itemsize
    cfg = _choose_config(m_hint, E, H, x_isz, w_isz, o_isz=4)
    E_pad, H_pad = cfg["E_pad"], cfg["H_pad"]

    def _pad2(a, r, c):
        if a.shape == (r, c):
            return a
        return jnp.pad(a, ((0, r - a.shape[0]), (0, c - a.shape[1])))

    w1p = _pad2(w1, E_pad, H_pad)
    w2p = _pad2(w2, H_pad, E_pad)
    b1p = _pad2(b1.reshape(1, H), 1, H_pad)
    b2p = _pad2(b2.reshape(1, E), 1, E_pad)

    def forward(x):
        return _mlp_padded(x, w1p, b1p, w2p, b2p, E, H, cfg,
                           x_compute_dtype, out_dtype)

    return forward


def mlp_forward(x, w1, b1, w2, b2):
    """One-shot convenience wrapper; use make_mlp() for repeated calls."""
    return make_mlp(w1, b1, w2, b2, m_hint=x.shape[0] * x.shape[1])(x)


# --------------------------- init / reference ---------------------------------


def init_params(key, n_embed, n_hidden, dtype=jnp.float32):
    # Mimics nn.Linear's uniform(-1/sqrt(fan_in), 1/sqrt(fan_in)) init; weights
    # stored (in_features, out_features), i.e. transposed vs PyTorch.
    k1, k2, k3, k4 = jax.random.split(key, 4)
    lim1 = 1.0 / math.sqrt(n_embed)
    lim2 = 1.0 / math.sqrt(n_hidden)
    w1 = jax.random.uniform(k1, (n_embed, n_hidden), jnp.float32, -lim1, lim1).astype(dtype)
    b1 = jax.random.uniform(k2, (n_hidden,), jnp.float32, -lim1, lim1).astype(dtype)
    w2 = jax.random.uniform(k3, (n_hidden, n_embed), jnp.float32, -lim2, lim2).astype(dtype)
    b2 = jax.random.uniform(k4, (n_embed,), jnp.float32, -lim2, lim2).astype(dtype)
    return w1, b1, w2, b2


def _reference(x, w1, b1, w2, b2):
    h = jnp.dot(x.astype(jnp.float32), w1.astype(jnp.float32)) + b1.astype(jnp.float32)
    g = _gelu_tanh(h)
    return jnp.dot(g, w2.astype(jnp.float32)) + b2.astype(jnp.float32)


if __name__ == "__main__":
    B, S, E, H = 2, 8, 32, 64
    key = jax.random.PRNGKey(0)
    kx, kp = jax.random.split(key)
    x = jax.random.normal(kx, (B, S, E), jnp.float32)

    # --- f32 weights: tight correctness check (eval-mode dropout == identity) ---
    w1, b1, w2, b2 = init_params(kp, E, H, dtype=jnp.float32)
    fwd = make_mlp(w1, b1, w2, b2, m_hint=B * S)      # params padded once
    out = jax.block_until_ready(fwd(x))
    ref = _reference(x, w1, b1, w2, b2)
    assert out.shape == (B, S, E)
    assert jnp.allclose(out, ref.astype(out.dtype), atol=1e-5, rtol=1e-5)

    # --- bf16 weights (halves weight-streaming bytes): loose correctness check ---
    fwd_bf16 = make_mlp(w1.astype(jnp.bfloat16), b1.astype(jnp.bfloat16),
                        w2.astype(jnp.bfloat16), b2.astype(jnp.bfloat16),
                        m_hint=B * S)
    out_bf16 = jax.block_until_ready(fwd_bf16(x))
    assert out_bf16.shape == (B, S, E)
    assert out_bf16.dtype == x.dtype
    assert jnp.allclose(out_bf16, ref, atol=5e-2, rtol=5e-2)

    print("KERNEL_OK")
</pallas_src>

<mosaic_0001>
module attributes {stable_mosaic.version = 11 : i64} {
  func.func @_mlp_kernel_resident(%arg0: i32, %arg1: memref<16x128xf32, #tpu.memory_space<vmem>>, %arg2: memref<128x128xf32, #tpu.memory_space<vmem>>, %arg3: memref<1x128xf32, #tpu.memory_space<vmem>>, %arg4: memref<128x128xf32, #tpu.memory_space<vmem>>, %arg5: memref<1x128xf32, #tpu.memory_space<vmem>>, %arg6: memref<16x128xf32, #tpu.memory_space<vmem>>) attributes {dimension_semantics = [#tpu.dimension_semantics<parallel>], iteration_bounds = array<i64: 1>, scalar_prefetch = 0 : i64, scratch_operands = 0 : i64, tpu.core_type = #tpu.core_type<tc>, window_params = [{transform_indices = @transform_0, window_bounds = array<i64: 16, 128>}, {pipeline_mode = #tpu.pipeline_mode<synchronous>, transform_indices = @transform_1, window_bounds = array<i64: 128, 128>}, {pipeline_mode = #tpu.pipeline_mode<synchronous>, transform_indices = @transform_2, window_bounds = array<i64: 1, 128>}, {pipeline_mode = #tpu.pipeline_mode<synchronous>, transform_indices = @transform_3, window_bounds = array<i64: 128, 128>}, {pipeline_mode = #tpu.pipeline_mode<synchronous>, transform_indices = @transform_4, window_bounds = array<i64: 1, 128>}, {transform_indices = @transform_5, window_bounds = array<i64: 16, 128>}]} {
    %c0 = arith.constant 0 : index
    %c0_0 = arith.constant 0 : index
    %0 = vector.load %arg1[%c0, %c0_0] : memref<16x128xf32, #tpu.memory_space<vmem>>, vector<16x128xf32>
    %c0_1 = arith.constant 0 : index
    %c0_2 = arith.constant 0 : index
    %1 = vector.load %arg2[%c0_1, %c0_2] : memref<128x128xf32, #tpu.memory_space<vmem>>, vector<128x128xf32>
    %cst = arith.constant dense<0.000000e+00> : vector<16x128xf32>
    %2 = tpu.matmul %0, %1, %cst {dimension_numbers = #tpu.dot_dimension_numbers<[1], [0], [0], [1], [0, 0, 1, 1], [], []>} : vector<16x128xf32>, vector<128x128xf32>, vector<16x128xf32> -> vector<16x128xf32>
    %c0_3 = arith.constant 0 : index
    %c0_4 = arith.constant 0 : index
    %3 = vector.load %arg3[%c0_3, %c0_4] : memref<1x128xf32, #tpu.memory_space<vmem>>, vector<1x128xf32>
    %4 = vector.broadcast %3 : vector<1x128xf32> to vector<16x128xf32>
    %5 = arith.addf %2, %4 : vector<16x128xf32>
    %cst_5 = arith.constant 0.797884583 : f32
    %6 = vector.broadcast %cst_5 : f32 to vector<16x128xf32>
    %7 = arith.mulf %6, %5 : vector<16x128xf32>
    %cst_6 = arith.constant 4.471500e-02 : f32
    %8 = vector.broadcast %cst_6 : f32 to vector<16x128xf32>
    %9 = arith.mulf %8, %5 : vector<16x128xf32>
    %10 = arith.mulf %9, %5 : vector<16x128xf32>
    %cst_7 = arith.constant 1.000000e+00 : f32
    %11 = vector.broadcast %cst_7 : f32 to vector<16x128xf32>
    %12 = arith.addf %11, %10 : vector<16x128xf32>
    %13 = arith.mulf %7, %12 : vector<16x128xf32>
    %cst_8 = arith.constant 5.000000e-01 : f32
    %14 = vector.broadcast %cst_8 : f32 to vector<16x128xf32>
    %15 = arith.mulf %14, %5 : vector<16x128xf32>
    %16 = math.tanh %13 : vector<16x128xf32>
    %cst_9 = arith.constant 1.000000e+00 : f32
    %17 = vector.broadcast %cst_9 : f32 to vector<16x128xf32>
    %18 = arith.addf %17, %16 : vector<16x128xf32>
    %19 = arith.mulf %15, %18 : vector<16x128xf32>
    %c0_10 = arith.constant 0 : index
    %c0_11 = arith.constant 0 : index
    %20 = vector.load %arg4[%c0_10, %c0_11] : memref<128x128xf32, #tpu.memory_space<vmem>>, vector<128x128xf32>
    %cst_12 = arith.constant dense<0.000000e+00> : vector<16x128xf32>
    %21 = tpu.matmul %19, %20, %cst_12 {dimension_numbers = #tpu.dot_dimension_numbers<[1], [0], [0], [1], [0, 0, 1, 1], [], []>} : vector<16x128xf32>, vector<128x128xf32>, vector<16x128xf32> -> vector<16x128xf32>
    %c0_13 = arith.constant 0 : index
    %c0_14 = arith.constant 0 : index
    %22 = vector.load %arg5[%c0_13, %c0_14] : memref<1x128xf32, #tpu.memory_space<vmem>>, vector<1x128xf32>
    %23 = vector.broadcast %22 : vector<1x128xf32> to vector<16x128xf32>
    %24 = arith.addf %21, %23 : vector<16x128xf32>
    %c0_15 = arith.constant 0 : index
    %c0_16 = arith.constant 0 : index
    %25 = vector.load %arg6[%c0_15, %c0_16] : memref<16x128xf32, #tpu.memory_space<vmem>>, vector<16x128xf32>
    tpu.vector_store %arg6[%c0_15, %c0_16], %24 {strides = array<i32>} : memref<16x128xf32, #tpu.memory_space<vmem>>, vector<16x128xf32>,
    return
  }
  func.func @transform_0(%arg0: i32) -> (i32, i32) {
    %c0_i32 = arith.constant 0 : i32
    %c0_i32_0 = arith.constant 0 : i32
    return %arg0, %c0_i32 : i32, i32
  }
  func.func @transform_1(%arg0: i32) -> (i32, i32) {
    %c0_i32 = arith.constant 0 : i32
    %c0_i32_0 = arith.constant 0 : i32
    %c0_i32_1 = arith.constant 0 : i32
    return %c0_i32, %c0_i32_0 : i32, i32
  }
  func.func @transform_2(%arg0: i32) -> (i32, i32) {
    %c0_i32 = arith.constant 0 : i32
    %c0_i32_0 = arith.constant 0 : i32
    %c0_i32_1 = arith.constant 0 : i32
    return %c0_i32, %c0_i32_0 : i32, i32
  }
  func.func @transform_3(%arg0: i32) -> (i32, i32) {
    %c0_i32 = arith.constant 0 : i32
    %c0_i32_0 = arith.constant 0 : i32
    %c0_i32_1 = arith.constant 0 : i32
    return %c0_i32, %c0_i32_0 : i32, i32
  }
  func.func @transform_4(%arg0: i32) -> (i32, i32) {
    %c0_i32 = arith.constant 0 : i32
    %c0_i32_0 = arith.constant 0 : i32
    %c0_i32_1 = arith.constant 0 : i32
    return %c0_i32, %c0_i32_0 : i32, i32
  }
  func.func @transform_5(%arg0: i32) -> (i32, i32) {
    %c0_i32 = arith.constant 0 : i32
    %c0_i32_0 = arith.constant 0 : i32
    return %arg0, %c0_i32 : i32, i32
  }
}

</mosaic_0001>

<llo_original>
// kernel: tpu_custom_call.1
$region0: #{tpu_custom_call.1}
  #allocation0 [shape = 'u32[]', space=smem, size = 0x4, offset = 0x4, fixed_abs, tag = 'smem constant byte address 0x4 - core index']
  #allocation1 [shape = 'u32[72,128]{1,0:T(1,128)}', space=vmem, size = 0x9000, scoped, tag = 'internal scratch']
  %s0 = inlined_call_operand.hbm [shape: f32[16,128], index: 0, kind: input, shape index: {}]
  %s1 = inlined_call_operand.hbm [shape: f32[128,128], index: 1, kind: input, shape index: {}]
  %s2 = inlined_call_operand.vmem [shape: f32[1,128], index: 2, kind: input, shape index: {}]
  %s3 = inlined_call_operand.hbm [shape: f32[128,128], index: 3, kind: input, shape index: {}]
  %s4 = inlined_call_operand.vmem [shape: f32[1,128], index: 4, kind: input, shape index: {}]
  %s5 = inlined_call_operand.hbm [shape: f32[16,128], index: 5, kind: output, shape index: {}]
  %s6 = sld [smem:[#allocation0]]
  $region42: #{tpu_custom_call.1} parent=0
    _
  %s8 = ssub.s32 1, %s6
  %s9 = scalar_select 0, %s8, %s6
  $region1: #{tpu_custom_call.1} parent=0
    #allocation2 [shape = 'u8[8192]{0}', space=vmem, size = 0x2000, scoped, tag = 'input window, operand 0, single buffered']
    #allocation3 [shape = 's32[1]{0}', space=sflag, size = 0x4, scoped, tag = 'scoped memory for tpu_custom_call.1']
    #allocation4 [shape = 's32[1]{0}', space=sflag, size = 0x4, scoped, tag = 'scoped memory for tpu_custom_call.1']
    #allocation5 [shape = 'u8[65536]{0}', space=vmem, size = 0x10000, scoped, tag = 'input window, operand 1, single buffered']
    #allocation6 [shape = 's32[1]{0}', space=sflag, size = 0x4, scoped, tag = 'scoped memory for tpu_custom_call.1']
    #allocation7 [shape = 'u8[65536]{0}', space=vmem, size = 0x10000, scoped, tag = 'input window, operand 3, single buffered']
    #allocation8 [shape = 'u8[8192]{0}', space=vmem, size = 0x2000, scoped, tag = 'output window, operand 0, single buffered']
    %10 = vsyncpa [#allocation3], 0
    %11 = vsyncpa [#allocation6], 0
    %12 = vsyncpa [#allocation4], 0
    // Predicated region
    $region2: #{tpu_custom_call.1} parent=1 // pred_check
      _
    $region3: #{tpu_custom_call.1} parent=1 // pred_check_branch
      %14 = sbr.rel (0) target = $region5
    $region4: #{tpu_custom_call.1} parent=1 // pred_region
      %16 = vsyncadd [#allocation3], 0
      %s17 = sshll.u32 %s0, 4
      %s18 = int_to_ptr.hbm [resolvable:$true] %s17
      %s19 = sshll.u32 [#allocation2], 4
      %s20 = int_to_ptr.vmem [resolvable:$true] %s19
      %25 = dma.hbm_to_vmem [thread:$0]  %s18, 256, %s20, [#allocation3], 128, 128, 8
    $region5: #{tpu_custom_call.1} parent=1 // pred_fallthru
      _
    // Predicated region
    $region6: #{tpu_custom_call.1} parent=1 // pred_check
      _
    $region7: #{tpu_custom_call.1} parent=1 // pred_check_branch
      %27 = sbr.rel (0) target = $region9
    $region8: #{tpu_custom_call.1} parent=1 // pred_region
      %29 = vsyncadd [#allocation6], 0
      %s30 = sshll.u32 %s1, 4
      %s31 = int_to_ptr.hbm [resolvable:$true] %s30
      %s32 = sshll.u32 [#allocation5], 4
      %s33 = int_to_ptr.vmem [resolvable:$true] %s32
      %38 = dma.hbm_to_vmem [thread:$0]  %s31, 2048, %s33, [#allocation6], 128, 128, 8
    $region9: #{tpu_custom_call.1} parent=1 // pred_fallthru
      _
    // Predicated region
    $region10: #{tpu_custom_call.1} parent=1 // pred_check
      _
    $region11: #{tpu_custom_call.1} parent=1 // pred_check_branch
      %40 = sbr.rel (0) target = $region13
    $region12: #{tpu_custom_call.1} parent=1 // pred_region
      _
    $region13: #{tpu_custom_call.1} parent=1 // pred_fallthru
      _
    // Predicated region
    $region14: #{tpu_custom_call.1} parent=1 // pred_check
      _
    $region15: #{tpu_custom_call.1} parent=1 // pred_check_branch
      %42 = sbr.rel (0) target = $region17
    $region16: #{tpu_custom_call.1} parent=1 // pred_region
      %44 = vsyncadd [#allocation6], 0
      %s45 = sshll.u32 %s3, 4
      %s46 = int_to_ptr.hbm [resolvable:$true] %s45
      %s47 = sshll.u32 [#allocation7], 4
      %s48 = int_to_ptr.vmem [resolvable:$true] %s47
      %53 = dma.hbm_to_vmem [thread:$0]  %s46, 2048, %s48, [#allocation6], 128, 128, 8
    $region17: #{tpu_custom_call.1} parent=1 // pred_fallthru
      _
    // Predicated region
    $region18: #{tpu_custom_call.1} parent=1 // pred_check
      _
    $region19: #{tpu_custom_call.1} parent=1 // pred_check_branch
      %55 = sbr.rel (0) target = $region21
    $region20: #{tpu_custom_call.1} parent=1 // pred_region
      _
    $region21: #{tpu_custom_call.1} parent=1 // pred_fallthru
      _
    // Predicated region
    $region22: #{tpu_custom_call.1} parent=1 // pred_check
      _
    $region23: #{tpu_custom_call.1} parent=1 // pred_check_branch
      %57 = sbr.rel (0) target = $region25
    $region24: #{tpu_custom_call.1} parent=1 // pred_region
      %59 = dma.done [#allocation3], 256
    $region25: #{tpu_custom_call.1} parent=1 // pred_fallthru
      _
    // Predicated region
    $region26: #{tpu_custom_call.1} parent=1 // pred_check
      _
    $region27: #{tpu_custom_call.1} parent=1 // pred_check_branch
      %61 = sbr.rel (0) target = $region29
    $region28: #{tpu_custom_call.1} parent=1 // pred_region
      %63 = dma.done [#allocation6], 2048
    $region29: #{tpu_custom_call.1} parent=1 // pred_fallthru
      _
    // Predicated region
    $region30: #{tpu_custom_call.1} parent=1 // pred_check
      _
    $region31: #{tpu_custom_call.1} parent=1 // pred_check_branch
      %65 = sbr.rel (0) target = $region33
    $region32: #{tpu_custom_call.1} parent=1 // pred_region
      %67 = dma.done [#allocation6], 2048
    $region33: #{tpu_custom_call.1} parent=1 // pred_fallthru
      _
    %v68 = vld [vmem:[#allocation2] sm:$0xff]
    %v69 = vld [vmem:[#allocation2 + $0x8] sm:$0xff]
    %v70 = vld [vmem:[#allocation5] sm:$0xff]
    %v71 = vld [vmem:[#allocation5 + $0x8] sm:$0xff]
    %v72 = vld [vmem:[#allocation5 + $0x10] sm:$0xff]
    %v73 = vld [vmem:[#allocation5 + $0x18] sm:$0xff]
    %v74 = vld [vmem:[#allocation5 + $0x20] sm:$0xff]
    %v75 = vld [vmem:[#allocation5 + $0x28] sm:$0xff]
    %v76 = vld [vmem:[#allocation5 + $0x30] sm:$0xff]
    %v77 = vld [vmem:[#allocation5 + $0x38] sm:$0xff]
    %v78 = vld [vmem:[#allocation5 + $0x40] sm:$0xff]
    %v79 = vld [vmem:[#allocation5 + $0x48] sm:$0xff]
    %v80 = vld [vmem:[#allocation5 + $0x50] sm:$0xff]
    %v81 = vld [vmem:[#allocation5 + $0x58] sm:$0xff]
    %v82 = vld [vmem:[#allocation5 + $0x60] sm:$0xff]
    %v83 = vld [vmem:[#allocation5 + $0x68] sm:$0xff]
    %v84 = vld [vmem:[#allocation5 + $0x70] sm:$0xff]
    %v85 = vld [vmem:[#allocation5 + $0x78] sm:$0xff]
    %v86 = vld [vmem:[%s2] sm:$0x1]
    %v88 = vperm.slane %v86, 0
    %90 = vmatpush.msra.mxu0 %v85
    %91 = vmatpush.msra.mxu0 %v84
    %92 = vmatpush.msra.mxu0 %v83
    %93 = vmatpush.msra.mxu0 %v82
    %94 = vmatpush.msra.mxu0 %v81
    %95 = vmatpush.msra.mxu0 %v80
    %96 = vmatpush.msra.mxu0 %v79
    %97 = vmatpush.msra.mxu0 %v78
    %98 = vmatpush.msra.mxu0 %v77
    %99 = vmatpush.msra.mxu0 %v76
    %100 = vmatpush.msra.mxu0 %v75
    %101 = vmatpush.msra.mxu0 %v74
    %102 = vmatpush.msra.mxu0 %v73
    %103 = vmatpush.msra.mxu0 %v72
    %104 = vmatpush.msra.mxu0 %v71
    %105 = vmatpush.msra.mxu0 %v70
    %106 = vmatmul.f32.gmra.mxu0 %v68
    %v107 = vpop.f32.mrf.mxu0
    %v108 = vadd.f32 %v88, %v107
    %109 = vmatmul.f32.gmra.mxu0 %v69
    %v110 = vpop.f32.mrf.mxu0
    %v111 = vadd.f32 %v88, %v110
    %112 = vdwg.mxu0
    %v113 = vmul.f32 %v108, 0.7978846
    %v114 = vmul.f32 %v111, 0.7978846
    %v115 = vmul.f32 %v108, 0.044715
    %v116 = vmul.f32 %v111, 0.044715
    %v117 = vmul.f32 %v115, %v108
    %v118 = vmul.f32 %v116, %v111
    %v119 = vadd.f32 %v117, 1.0
    %v120 = vadd.f32 %v118, 1.0
    %v121 = vmul.f32 %v113, %v119
    %v122 = vmul.f32 %v114, %v120
    %v123 = vmul.f32 %v108, 0.5
    %v124 = vmul.f32 %v111, 0.5
    %v125 = vtanh.pop %v121
    %v126 = vtanh.pop %v122
    %v127 = vadd.f32 %v125, 1.0
    %v128 = vadd.f32 %v126, 1.0
    %v129 = vmul.f32 %v123, %v127
    %v130 = vmul.f32 %v124, %v128
    %v131 = vld [vmem:[#allocation7] sm:$0xff]
    %v132 = vld [vmem:[#allocation7 + $0x8] sm:$0xff]
    %v133 = vld [vmem:[#allocation7 + $0x10] sm:$0xff]
    %v134 = vld [vmem:[#allocation7 + $0x18] sm:$0xff]
    %v135 = vld [vmem:[#allocation7 + $0x20] sm:$0xff]
    %v136 = vld [vmem:[#allocation7 + $0x28] sm:$0xff]
    %v137 = vld [vmem:[#allocation7 + $0x30] sm:$0xff]
    %v138 = vld [vmem:[#allocation7 + $0x38] sm:$0xff]
    %v139 = vld [vmem:[#allocation7 + $0x40] sm:$0xff]
    %v140 = vld [vmem:[#allocation7 + $0x48] sm:$0xff]
    %v141 = vld [vmem:[#allocation7 + $0x50] sm:$0xff]
    %v142 = vld [vmem:[#allocation7 + $0x58] sm:$0xff]
    %v143 = vld [vmem:[#allocation7 + $0x60] sm:$0xff]
    %v144 = vld [vmem:[#allocation7 + $0x68] sm:$0xff]
    %v145 = vld [vmem:[#allocation7 + $0x70] sm:$0xff]
    %v146 = vld [vmem:[#allocation7 + $0x78] sm:$0xff]
    %v147 = vld [vmem:[%s4] sm:$0x1]
    %v149 = vperm.slane %v147, 0
    %151 = vmatpush.msra.mxu0 %v146
    %152 = vmatpush.msra.mxu0 %v145
    %153 = vmatpush.msra.mxu0 %v144
    %154 = vmatpush.msra.mxu0 %v143
    %155 = vmatpush.msra.mxu0 %v142
    %156 = vmatpush.msra.mxu0 %v141
    %157 = vmatpush.msra.mxu0 %v140
    %158 = vmatpush.msra.mxu0 %v139
    %159 = vmatpush.msra.mxu0 %v138
    %160 = vmatpush.msra.mxu0 %v137
    %161 = vmatpush.msra.mxu0 %v136
    %162 = vmatpush.msra.mxu0 %v135
    %163 = vmatpush.msra.mxu0 %v134
    %164 = vmatpush.msra.mxu0 %v133
    %165 = vmatpush.msra.mxu0 %v132
    %166 = vmatpush.msra.mxu0 %v131
    %167 = vmatmul.f32.gmra.mxu0 %v129
    %v168 = vpop.f32.mrf.mxu0
    %v169 = vadd.f32 %v149, %v168
    %170 = vmatmul.f32.gmra.mxu0 %v130
    %v171 = vpop.f32.mrf.mxu0
    %v172 = vadd.f32 %v149, %v171
    %173 = vdwg.mxu0
    %174 = vst [vmem:[#allocation8] sm:$0xff] %v169
    %175 = vst [vmem:[#allocation8 + $0x8] sm:$0xff] %v172
    // Predicated region
    $region34: #{tpu_custom_call.1} parent=1 // pred_check
      _
    $region35: #{tpu_custom_call.1} parent=1 // pred_check_branch
      %177 = sbr.rel (0) target = $region37
    $region36: #{tpu_custom_call.1} parent=1 // pred_region
      %179 = vsyncadd [#allocation4], 0
      %s180 = sshll.u32 [#allocation8], 4
      %s181 = int_to_ptr.vmem [resolvable:$true] %s180
      %s182 = sshll.u32 %s5, 4
      %s183 = int_to_ptr.hbm [resolvable:$true] %s182
      %188 = dma.vmem_to_hbm [thread:$0]  %s181, 256, %s183, [#allocation4], 128, 128, 8
    $region37: #{tpu_custom_call.1} parent=1 // pred_fallthru
      _
    // Predicated region
    $region38: #{tpu_custom_call.1} parent=1 // pred_check
      _
    $region39: #{tpu_custom_call.1} parent=1 // pred_check_branch
      %190 = sbr.rel (0) target = $region41
    $region40: #{tpu_custom_call.1} parent=1 // pred_region
      %192 = dma.done [#allocation4], 256
    $region41: #{tpu_custom_call.1} parent=1 // pred_fallthru
      _
    %193 = vsyncpa [#allocation3], 1
    %194 = vsyncpa [#allocation6], 1
    %195 = vsyncpa [#allocation4], 1

</llo_original>
